<compile_context>
chip_gen: v7x
topology: tpu7x:2x2x1
jax: 0.10.0
libtpu: 0.0.40
codegen_flags: <defaults>
</compile_context>

<pallas_src>
import functools

import jax
import jax.numpy as jnp
from jax.experimental import pallas as pl
from jax.experimental.pallas import tpu as pltpu

IN_F = 64
HID_F = 128
OUT_F = 128

# Max row tile. 2048 rows -> x tile 512 KiB + out tile 1 MiB (f32); double
# buffered ~3 MiB plus tiny weight/bias buffers -- far below every
# generation's scoped-VMEM default (16 MiB v5e, 32 MiB v6e/v7x), while
# amortizing the ~0.35 us per-grid-step overhead.
MAX_TILE_M = 2048


def _myblock_kernel(x_ref, w_ref, b_ref, o_ref):
    # x_ref: (tile_m, 64)  w_ref: (64, 128)  b_ref: (1, 128)  o_ref: (tile_m, 128)
    acc = jnp.dot(x_ref[...], w_ref[...], preferred_element_type=jnp.float32)
    o_ref[...] = (acc + b_ref[...]).astype(o_ref.dtype)


def _choose_tile_m(m):
    # Keep >= 2 grid steps (so the "parallel" axis spans both v7x TensorCores
    # for medium M) but never exceed MAX_TILE_M; keep sublane (8) alignment.
    half = -(-m // 2)                      # cdiv(m, 2)
    tile = ((half + 7) // 8) * 8           # round up to a multiple of 8
    return max(8, min(MAX_TILE_M, tile))


@functools.partial(jax.jit, static_argnames=("min_rows_for_pallas",))
def myblock_forward(x, w1, b1, w2, b2, min_rows_for_pallas=512):
    """forward(x) = out_proj(q_proj(x)) with PyTorch Linear params.

    x: (..., 64) f32.  w1: (128, 64), b1: (128,), w2: (128, 128), b2: (128,).
    """
    orig_shape = x.shape
    m = 1
    for d in orig_shape[:-1]:
        m *= d
    x2d = x.reshape(m, IN_F)

    # Affine fusion (done once per call, folded into this jit's dispatch).
    w_eff_t = jnp.dot(w2, w1).T                     # (64, 128): row-major x @ W
    b_eff_r = (jnp.dot(w2, b1) + b2).reshape(1, OUT_F)

    if m < min_rows_for_pallas:
        # Tiny inputs: pallas_call launch/DMA-descriptor overhead dominates;
        # XLA's fused dot+bias is strictly faster below a few hundred rows.
        out = jnp.dot(x2d, w_eff_t) + b_eff_r
        return out.reshape(*orig_shape[:-1], OUT_F)

    tile_m = _choose_tile_m(m)
    grid_m = pl.cdiv(m, tile_m)   # partial edge block masked by Pallas; no pad/slice

    cost = pl.CostEstimate(
        flops=2 * m * IN_F * OUT_F,
        transcendentals=0,
        bytes_accessed=(m * IN_F + m * OUT_F + IN_F * OUT_F + OUT_F) * 4,
    )

    out = pl.pallas_call(
        _myblock_kernel,
        out_shape=jax.ShapeDtypeStruct((m, OUT_F), x.dtype),
        grid_spec=pltpu.PrefetchScalarGridSpec(
            num_scalar_prefetch=0,
            grid=(grid_m,),
            in_specs=[
                pl.BlockSpec((tile_m, IN_F), lambda i: (i, 0)),   # row tiles of x
                pl.BlockSpec((IN_F, OUT_F), lambda i: (0, 0)),    # fused weight (invariant)
                pl.BlockSpec((1, OUT_F), lambda i: (0, 0)),       # fused bias (invariant)
            ],
            out_specs=pl.BlockSpec((tile_m, OUT_F), lambda i: (i, 0)),
        ),
        compiler_params=pltpu.CompilerParams(
            dimension_semantics=("parallel",)),   # shard row tiles across TCs (v7x)
        cost_estimate=cost,
    )(x2d, w_eff_t, b_eff_r)

    return out.reshape(*orig_shape[:-1], OUT_F)


def _init_params(key):
    # Deterministic synthetic init (Kaiming-uniform-ish bounds like nn.Linear).
    k1, k2, k3, k4 = jax.random.split(key, 4)
    bound1 = 1.0 / (IN_F ** 0.5)
    bound2 = 1.0 / (HID_F ** 0.5)
    w1 = jax.random.uniform(k1, (HID_F, IN_F), jnp.float32, -bound1, bound1)
    b1 = jax.random.uniform(k2, (HID_F,), jnp.float32, -bound1, bound1)
    w2 = jax.random.uniform(k3, (OUT_F, HID_F), jnp.float32, -bound2, bound2)
    b2 = jax.random.uniform(k4, (OUT_F,), jnp.float32, -bound2, bound2)
    return w1, b1, w2, b2


def _reference(x, w1, b1, w2, b2):
    # Unfused reference matching PyTorch semantics exactly.
    return (x @ w1.T + b1) @ w2.T + b2


if __name__ == "__main__":
    key = jax.random.PRNGKey(0)
    kx1, kx2, kp = jax.random.split(key, 3)
    w1, b1, w2, b2 = _init_params(kp)

    # 1) small shape implied by the module: (batch=2, seq=8, hidden=64)
    #    min_rows_for_pallas=0 so the Pallas kernel is exercised even here.
    x_small = jax.random.normal(kx1, (2, 8, IN_F), dtype=jnp.float32)
    z_small = jax.block_until_ready(
        myblock_forward(x_small, w1, b1, w2, b2, min_rows_for_pallas=0))
    ref_small = _reference(x_small, w1, b1, w2, b2)
    assert z_small.shape == (2, 8, OUT_F), z_small.shape
    assert jnp.allclose(z_small, ref_small, atol=1e-3, rtol=1e-4), \
        "mismatch vs reference (small)"

    # 2) larger shape to exercise row tiling (m = 1200 -> 2 tiles of 600 rows)
    x_big = jax.random.normal(kx2, (4, 300, IN_F), dtype=jnp.float32)
    z_big = jax.block_until_ready(
        myblock_forward(x_big, w1, b1, w2, b2, min_rows_for_pallas=0))
    ref_big = _reference(x_big, w1, b1, w2, b2)
    assert z_big.shape == (4, 300, OUT_F), z_big.shape
    assert jnp.allclose(z_big, ref_big, atol=1e-3, rtol=1e-4), \
        "mismatch vs reference (tiled)"

    print("KERNEL_OK")
</pallas_src>

<mosaic_0001>
module attributes {stable_mosaic.version = 11 : i64} {
  func.func @_myblock_kernel(%arg0: i32, %arg1: memref<8x64xf32, #tpu.memory_space<vmem>>, %arg2: memref<64x128xf32, #tpu.memory_space<vmem>>, %arg3: memref<1x128xf32, #tpu.memory_space<vmem>>, %arg4: memref<8x128xf32, #tpu.memory_space<vmem>>) attributes {dimension_semantics = [#tpu.dimension_semantics<parallel>], iteration_bounds = array<i64: 2>, scalar_prefetch = 0 : i64, scratch_operands = 0 : i64, tpu.core_type = #tpu.core_type<tc>, window_params = [{transform_indices = @transform_0, window_bounds = array<i64: 8, 64>}, {pipeline_mode = #tpu.pipeline_mode<synchronous>, transform_indices = @transform_1, window_bounds = array<i64: 64, 128>}, {pipeline_mode = #tpu.pipeline_mode<synchronous>, transform_indices = @transform_2, window_bounds = array<i64: 1, 128>}, {transform_indices = @transform_3, window_bounds = array<i64: 8, 128>}]} {
    %c0 = arith.constant 0 : index
    %c0_0 = arith.constant 0 : index
    %0 = vector.load %arg1[%c0, %c0_0] : memref<8x64xf32, #tpu.memory_space<vmem>>, vector<8x64xf32>
    %c0_1 = arith.constant 0 : index
    %c0_2 = arith.constant 0 : index
    %1 = vector.load %arg2[%c0_1, %c0_2] : memref<64x128xf32, #tpu.memory_space<vmem>>, vector<64x128xf32>
    %cst = arith.constant dense<0.000000e+00> : vector<8x128xf32>
    %2 = tpu.matmul %0, %1, %cst {dimension_numbers = #tpu.dot_dimension_numbers<[1], [0], [0], [1], [0, 0, 1, 1], [], []>} : vector<8x64xf32>, vector<64x128xf32>, vector<8x128xf32> -> vector<8x128xf32>
    %c0_3 = arith.constant 0 : index
    %c0_4 = arith.constant 0 : index
    %3 = vector.load %arg3[%c0_3, %c0_4] : memref<1x128xf32, #tpu.memory_space<vmem>>, vector<1x128xf32>
    %4 = vector.broadcast %3 : vector<1x128xf32> to vector<8x128xf32>
    %5 = arith.addf %2, %4 : vector<8x128xf32>
    %c0_5 = arith.constant 0 : index
    %c0_6 = arith.constant 0 : index
    %6 = vector.load %arg4[%c0_5, %c0_6] : memref<8x128xf32, #tpu.memory_space<vmem>>, vector<8x128xf32>
    tpu.vector_store %arg4[%c0_5, %c0_6], %5 {strides = array<i32>} : memref<8x128xf32, #tpu.memory_space<vmem>>, vector<8x128xf32>,
    return
  }
  func.func @transform_0(%arg0: i32) -> (i32, i32) {
    %c0_i32 = arith.constant 0 : i32
    %c0_i32_0 = arith.constant 0 : i32
    return %arg0, %c0_i32 : i32, i32
  }
  func.func @transform_1(%arg0: i32) -> (i32, i32) {
    %c0_i32 = arith.constant 0 : i32
    %c0_i32_0 = arith.constant 0 : i32
    %c0_i32_1 = arith.constant 0 : i32
    return %c0_i32, %c0_i32_0 : i32, i32
  }
  func.func @transform_2(%arg0: i32) -> (i32, i32) {
    %c0_i32 = arith.constant 0 : i32
    %c0_i32_0 = arith.constant 0 : i32
    %c0_i32_1 = arith.constant 0 : i32
    return %c0_i32, %c0_i32_0 : i32, i32
  }
  func.func @transform_3(%arg0: i32) -> (i32, i32) {
    %c0_i32 = arith.constant 0 : i32
    %c0_i32_0 = arith.constant 0 : i32
    return %arg0, %c0_i32 : i32, i32
  }
}

</mosaic_0001>

<llo_original>
// kernel: myblock_forward.1
$region0: #{myblock_forward.1}
  #allocation0 [shape = 'u32[]', space=smem, size = 0x4, offset = 0x4, fixed_abs, tag = 'smem constant byte address 0x4 - core index']
  #allocation1 [shape = 'u32[144,128]{1,0:T(1,128)}', space=vmem, size = 0x12000, scoped, tag = 'internal scratch']
  %s0 = inlined_call_operand.vmem [shape: f32[16,64], index: 0, kind: input, shape index: {}]
  %s1 = inlined_call_operand.vmem [shape: f32[64,128], index: 1, kind: input, shape index: {}]
  %s2 = inlined_call_operand.vmem [shape: f32[1,128], index: 2, kind: input, shape index: {}]
  %s3 = inlined_call_operand.hbm [shape: f32[16,128], index: 3, kind: output, shape index: {}]
  %s4 = sld [smem:[#allocation0]]
  $region45: #{myblock_forward.1} parent=0
    _
  %s6 = ssub.s32 1, %s4
  %s7 = scalar_select 0, %s6, %s4
  $region1: #{myblock_forward.1} parent=0
    #allocation2 [shape = 'u8[8192]{0}', space=vmem, size = 0x2000, scoped, tag = 'output window, operand 0']
    #allocation3 [shape = 's32[2]{0}', space=sflag, size = 0x8, scoped, tag = 'scoped memory for myblock_forward.1']
    %8 = vsyncpa [#allocation3], 0
    %s9 = scalar_lea.sflag [#allocation3], 1
    %10 = vsyncpa %s9, 0
    loop: start=0, step=1, limit=4
    $region2: #{myblock_forward.1} parent=1 // loop_pre_header
      _
    $region3: #{myblock_forward.1} parent=1 // loop_header
      %s12 = sphi 0, %s16
      %p13 = scmp.ge.s32.totalorder %s12, 4
      %s22 = sphi 0, %s24
      %s25 = sphi 0, %s22
      %s26 = sphi 0, %s25
      %s42 = sphi 0, %s26
      %s46 = sphi 0, %s46
      %s48 = sphi 0, %s46
      %s49 = sphi 0, %s48
      %s63 = sphi 0, %s49
      %s67 = sphi 0, %s67
      %s69 = sphi 0, %s67
      %s70 = sphi 0, %s69
      %s84 = sphi 0, %s70
      %s90 = sphi 0, %s92
      %s93 = sphi 0, %s90
      %s94 = sphi 0, %s93
      %s110 = sphi 0, %s94
    $region4: #{myblock_forward.1} parent=1 // loop_header_branch
      %15 = sbr.rel (%p13) target = $region8
    $region5: #{myblock_forward.1} parent=1 // loop_body
      %s17 = ssub.s32 %s12, 1
      %s18 = ssub.s32 %s12, 2
      %s19 = sadd.s32 %s12, 1
      %s20 = ssub.s32 %s12, %s19
      %p21 = scmp.eq.s32.totalorder %s20, 0
      %s23 = sadd.s32 %s22, 1
      %s24 = scalar_select %p21, %s22, %s23
      %p27 = pneg %p21
      %p28 = scmp.eq.s32.totalorder %s12, 1
      %p29 = por %p27, %p28
      %p30 = scmp.ne.s32.totalorder %s22, %s25
      %p31 = scmp.eq.s32.totalorder %s12, 0
      %p32 = por %p30, %p31
      %p33 = scmp.ne.s32.totalorder %s22, %s25
      %p34 = scmp.eq.s32.totalorder %s17, 1
      %p35 = por %p33, %p34
      %p36 = scmp.ne.s32.totalorder %s25, %s26
      %p37 = scmp.eq.s32.totalorder %s17, 0
      %p38 = por %p36, %p37
      %p39 = scmp.ne.s32.totalorder %s25, %s26
      %p40 = scmp.eq.s32.totalorder %s18, 1
      %p41 = por %p39, %p40
      %p43 = scmp.ne.s32.totalorder %s26, %s42
      %p44 = scmp.eq.s32.totalorder %s18, 0
      %p45 = por %p43, %p44
      %s47 = sadd.s32 %s46, 1
      %p50 = scmp.eq.s32.totalorder %s12, 1
      %p51 = scmp.ne.s32.totalorder %s46, %s48
      %p52 = scmp.eq.s32.totalorder %s12, 0
      %p53 = por %p51, %p52
      %p54 = scmp.ne.s32.totalorder %s46, %s48
      %p55 = scmp.eq.s32.totalorder %s17, 1
      %p56 = por %p54, %p55
      %p57 = scmp.ne.s32.totalorder %s48, %s49
      %p58 = scmp.eq.s32.totalorder %s17, 0
      %p59 = por %p57, %p58
      %p60 = scmp.ne.s32.totalorder %s48, %s49
      %p61 = scmp.eq.s32.totalorder %s18, 1
      %p62 = por %p60, %p61
      %p64 = scmp.ne.s32.totalorder %s49, %s63
      %p65 = scmp.eq.s32.totalorder %s18, 0
      %p66 = por %p64, %p65
      %s68 = sadd.s32 %s67, 1
      %p71 = scmp.eq.s32.totalorder %s12, 1
      %p72 = scmp.ne.s32.totalorder %s67, %s69
      %p73 = scmp.eq.s32.totalorder %s12, 0
      %p74 = por %p72, %p73
      %p75 = scmp.ne.s32.totalorder %s67, %s69
      %p76 = scmp.eq.s32.totalorder %s17, 1
      %p77 = por %p75, %p76
      %p78 = scmp.ne.s32.totalorder %s69, %s70
      %p79 = scmp.eq.s32.totalorder %s17, 0
      %p80 = por %p78, %p79
      %p81 = scmp.ne.s32.totalorder %s69, %s70
      %p82 = scmp.eq.s32.totalorder %s18, 1
      %p83 = por %p81, %p82
      %p85 = scmp.ne.s32.totalorder %s70, %s84
      %p86 = scmp.eq.s32.totalorder %s18, 0
      %p87 = por %p85, %p86
      %s88 = ssub.s32 %s12, %s19
      %p89 = scmp.eq.s32.totalorder %s88, 0
      %s91 = sadd.s32 %s90, 1
      %s92 = scalar_select %p89, %s90, %s91
      %p95 = pneg %p89
      %p96 = scmp.eq.s32.totalorder %s12, 1
      %p97 = por %p95, %p96
      %p98 = scmp.ne.s32.totalorder %s90, %s93
      %p99 = scmp.eq.s32.totalorder %s12, 0
      %p100 = por %p98, %p99
      %p101 = scmp.ne.s32.totalorder %s90, %s93
      %p102 = scmp.eq.s32.totalorder %s17, 1
      %p103 = por %p101, %p102
      %p104 = scmp.ne.s32.totalorder %s93, %s94
      %p105 = scmp.eq.s32.totalorder %s17, 0
      %p106 = por %p104, %p105
      %p107 = scmp.ne.s32.totalorder %s93, %s94
      %p108 = scmp.eq.s32.totalorder %s18, 1
      %p109 = por %p107, %p108
      %p111 = scmp.ne.s32.totalorder %s94, %s110
      %p112 = scmp.eq.s32.totalorder %s18, 0
      %p113 = por %p111, %p112
      %p114 = scmp.le.s32.totalorder 1, %s12
      %p115 = scmp.lt.s32.totalorder %s12, 3
      %p116 = pnand %p114, %p115
      %p117 = pneg %p116
      // Predicated region
      $region9: #{myblock_forward.1} parent=5 // pred_check
        _
      $region10: #{myblock_forward.1} parent=5 // pred_check_branch
        %119 = sbr.rel (%p116) target = $region12
      $region11: #{myblock_forward.1} parent=5 // pred_region
        %s120 = ssub.s32 %s12, 1
        // Predicated region
        $region13: #{myblock_forward.1} parent=11 // pred_check
          %p121 = pneg %p59
        $region14: #{myblock_forward.1} parent=11 // pred_check_branch
          %123 = sbr.rel (%p121) target = $region16
        $region15: #{myblock_forward.1} parent=11 // pred_region
          _
        $region16: #{myblock_forward.1} parent=11 // pred_fallthru
          _
        // Predicated region
        $region17: #{myblock_forward.1} parent=11 // pred_check
          %p124 = pneg %p80
        $region18: #{myblock_forward.1} parent=11 // pred_check_branch
          %126 = sbr.rel (%p124) target = $region20
        $region19: #{myblock_forward.1} parent=11 // pred_region
          _
        $region20: #{myblock_forward.1} parent=11 // pred_fallthru
          _
      $region12: #{myblock_forward.1} parent=5 // pred_fallthru
        _
      %p127 = scmp.lt.s32.totalorder %s12, 2
      // Predicated region
      $region21: #{myblock_forward.1} parent=5 // pred_check
        %p128 = pneg %p127
      $region22: #{myblock_forward.1} parent=5 // pred_check_branch
        %130 = sbr.rel (%p128) target = $region24
      $region23: #{myblock_forward.1} parent=5 // pred_region
        // Predicated region
        $region25: #{myblock_forward.1} parent=23 // pred_check
          %p131 = pneg %p32
        $region26: #{myblock_forward.1} parent=23 // pred_check_branch
          %133 = sbr.rel (%p131) target = $region28
        $region27: #{myblock_forward.1} parent=23 // pred_region
          %p134 = scmp.lt.s32.totalorder %s12, 1
          %s135 = scalar_select %p134, %s12, 1
          %s136 = smul.addr %s135, 8
          %s137 = scalar_lea.vmem %s0, %s136
        $region28: #{myblock_forward.1} parent=23 // pred_fallthru
          _
      $region24: #{myblock_forward.1} parent=5 // pred_fallthru
        _
      %p138 = scmp.le.s32.totalorder 1, %s12
      %p139 = scmp.lt.s32.totalorder %s12, 3
      %p140 = pnand %p138, %p139
      %p141 = pneg %p140
      // Predicated region
      $region29: #{myblock_forward.1} parent=5 // pred_check
        _
      $region30: #{myblock_forward.1} parent=5 // pred_check_branch
        %143 = sbr.rel (%p140) target = $region32
      $region31: #{myblock_forward.1} parent=5 // pred_region
        %s144 = ssub.s32 %s12, 1
        %p145 = scmp.lt.s32.totalorder %s17, 1
        %s146 = scalar_select %p145, %s17, 1
        %s147 = smul.addr %s146, 8
        %s148 = scalar_lea.vmem %s0, %s147
        %p149 = pneg %p38
        %p150 = pneg %p35
        %p151 = pneg %p59
        %p152 = pneg %p56
        %p153 = pneg %p80
        %p154 = pneg %p77
        %p155 = pneg %p106
        %p156 = pneg %p103
        %s157 = sand.u32 %s93, 1
        %s158 = scalar_lea.sflag [#allocation3], %s157
        %s159 = sand.u32 %s93, 1
        %s160 = smul.addr %s159, 8
        %s161 = scalar_lea.vmem [#allocation2], %s160
        %p162 = scmp.lt.s32.totalorder %s17, 1
        %s163 = scalar_select %p162, %s17, 1
        %s164 = smul.addr %s163, 8
        %s165 = scalar_lea.vmem %s0, %s164
        %v166 = vld [vmem:[%s165] sm:$0xff]
        %v167 = vld [vmem:[%s1] sm:$0xff]
        %v168 = vld [vmem:[%s1 + $0x8] sm:$0xff]
        %v169 = vld [vmem:[%s1 + $0x10] sm:$0xff]
        %v170 = vld [vmem:[%s1 + $0x18] sm:$0xff]
        %v171 = vld [vmem:[%s1 + $0x20] sm:$0xff]
        %v172 = vld [vmem:[%s1 + $0x28] sm:$0xff]
        %v173 = vld [vmem:[%s1 + $0x30] sm:$0xff]
        %v174 = vld [vmem:[%s1 + $0x38] sm:$0xff]
        %v175 = vld [vmem:[%s2] sm:$0x1]
        %v177 = vlaneseq
        %v178 = vshrl.u32 %v177, 7
        %v179 = vsub.s32 0, %v178
        %v180 = vrot.slane %v175, %v179
        %vm182 = vcmask 523264
        %v184 = vsel %vm182, %v166, 0
        %186 = vmatprep.subr.mxu0 0.0
        %187 = vmatpush1.msra.mxu0 %v167
        %188 = vmatprep.subr.mxu0 0.0
        %189 = vmatpush1.msra.mxu0 %v168
        %190 = vmatprep.subr.mxu0 0.0
        %191 = vmatpush1.msra.mxu0 %v169
        %192 = vmatprep.subr.mxu0 0.0
        %193 = vmatpush1.msra.mxu0 %v170
        %194 = vmatprep.subr.mxu0 0.0
        %195 = vmatpush1.msra.mxu0 %v171
        %196 = vmatprep.subr.mxu0 0.0
        %197 = vmatpush1.msra.mxu0 %v172
        %198 = vmatprep.subr.mxu0 0.0
        %199 = vmatpush1.msra.mxu0 %v173
        %200 = vmatprep.subr.mxu0 0.0
        %201 = vmatpush1.msra.mxu0 %v174
        %202 = vmatprep.subr.mxu0 0.0
        %203 = vmatpush1.msra.mxu0 0.0
        %204 = vmatprep.subr.mxu0 0.0
        %205 = vmatpush1.msra.mxu0 0.0
        %206 = vmatprep.subr.mxu0 0.0
        %207 = vmatpush1.msra.mxu0 0.0
        %208 = vmatprep.subr.mxu0 0.0
        %209 = vmatpush1.msra.mxu0 0.0
        %210 = vmatprep.subr.mxu0 0.0
        %211 = vmatpush1.msra.mxu0 0.0
        %212 = vmatprep.subr.mxu0 0.0
        %213 = vmatpush1.msra.mxu0 0.0
        %214 = vmatprep.subr.mxu0 0.0
        %215 = vmatpush1.msra.mxu0 0.0
        %216 = vmatprep.subr.mxu0 0.0
        %217 = vmatpush1.msra.mxu0 0.0
        %218 = vmatprep.subr.mxu0 0.0
        %219 = vmatpush1.msra.mxu0 0.0
        %220 = vmatprep.subr.mxu0 0.0
        %221 = vmatpush1.msra.mxu0 0.0
        %222 = vmatprep.subr.mxu0 0.0
        %223 = vmatpush1.msra.mxu0 0.0
        %224 = vmatprep.subr.mxu0 0.0
        %225 = vmatpush1.msra.mxu0 0.0
        %226 = vmatprep.subr.mxu0 0.0
        %227 = vmatpush1.msra.mxu0 0.0
        %228 = vmatprep.subr.mxu0 0.0
        %229 = vmatpush1.msra.mxu0 0.0
        %230 = vmatprep.subr.mxu0 0.0
        %231 = vmatpush1.msra.mxu0 0.0
        %232 = vmatprep.subr.mxu0 0.0
        %233 = vmatpush1.msra.mxu0 0.0
        %234 = vmatprep.subr.mxu0 0.0
        %235 = vmatpush1.msra.mxu0 0.0
        %236 = vmatprep.subr.mxu0 0.0
        %237 = vmatpush1.msra.mxu0 0.0
        %238 = vmatprep.subr.mxu0 0.0
        %239 = vmatpush1.msra.mxu0 0.0
        %240 = vmatprep.subr.mxu0 0.0
        %241 = vmatpush1.msra.mxu0 0.0
        %242 = vmatprep.subr.mxu0 0.0
        %243 = vmatpush1.msra.mxu0 0.0
        %244 = vmatprep.subr.mxu0 0.0
        %245 = vmatpush1.msra.mxu0 0.0
        %246 = vmatprep.subr.mxu0 0.0
        %247 = vmatpush1.msra.mxu0 0.0
        %248 = vmatprep.subr.mxu0 0.0
        %249 = vmatpush1.msra.mxu0 0.0
        %250 = vmatprep.mubr.f32.mxu0 0.0
        %251 = vmatmul.mubr.f32.gmra.mrb[0].mxu0 %v184
        %v252 = vpop.f32.mrb[0].mxu0
        %v253 = vadd.f32 %v180, %v252
        %v254 = vpop.f32.mrb[0].mxu0
        %255 = vdwg.mxu0
        %256 = vst [vmem:[%s161] sm:$0xff] %v253
        %s257 = sand.u32 %s93, 1
        %s258 = scalar_lea.sflag [#allocation3], %s257
        %s259 = sand.u32 %s93, 1
        %s260 = smul.addr %s259, 8
        %s261 = scalar_lea.vmem [#allocation2], %s260
        // Predicated region
        $region33: #{myblock_forward.1} parent=31 // pred_check
          %p262 = pneg %p103
        $region34: #{myblock_forward.1} parent=31 // pred_check_branch
          %264 = sbr.rel (%p262) target = $region36
        $region35: #{myblock_forward.1} parent=31 // pred_region
          %s266 = ssub.s32 128, 128
          %267 = vsyncadd %s258, %s266
          %s268 = smul.addr %s17, 128
          %s269 = scalar_lea.hbm %s3, %s268
          %s271 = sshll.u32 %s261, 4
          %s272 = int_to_ptr.vmem [resolvable:$true] %s271
          %274 = dma.vmem_to_hbm [thread:$0]  %s272, 128, %s269, %s258
        $region36: #{myblock_forward.1} parent=31 // pred_fallthru
          _
      $region32: #{myblock_forward.1} parent=5 // pred_fallthru
        _
      %p275 = scmp.le.s32.totalorder 2, %s12
      // Predicated region
      $region37: #{myblock_forward.1} parent=5 // pred_check
        %p276 = pneg %p275
      $region38: #{myblock_forward.1} parent=5 // pred_check_branch
        %278 = sbr.rel (%p276) target = $region40
      $region39: #{myblock_forward.1} parent=5 // pred_region
        %s279 = ssub.s32 %s12, 2
        // Predicated region
        $region41: #{myblock_forward.1} parent=39 // pred_check
          %p280 = pneg %p109
        $region42: #{myblock_forward.1} parent=39 // pred_check_branch
          %282 = sbr.rel (%p280) target = $region44
        $region43: #{myblock_forward.1} parent=39 // pred_region
          %s283 = sand.u32 %s94, 1
          %s284 = scalar_lea.sflag [#allocation3], %s283
          %s285 = sand.u32 %s94, 1
          %s286 = smul.addr %s285, 8
          %s287 = scalar_lea.vmem [#allocation2], %s286
          %288 = dma.done %s284, 128
        $region44: #{myblock_forward.1} parent=39 // pred_fallthru
          _
      $region40: #{myblock_forward.1} parent=5 // pred_fallthru
        _
    $region6: #{myblock_forward.1} parent=1 // loop_footer
      %s16 = sadd.s32 1, %s12
    $region7: #{myblock_forward.1} parent=1 // loop_footer_branch
      %11 = sbr.rel target = $region3
    $region8: #{myblock_forward.1} parent=1 // loop_exit
      _
    %289 = vsyncpa [#allocation3], 1
    %s290 = scalar_lea.sflag [#allocation3], 1
    %291 = vsyncpa %s290, 1

</llo_original>
